<compile_context>
chip_gen: v5e
topology: v5e:2x2
jax: 0.10.0
libtpu: 0.0.40
codegen_flags: <defaults>
</compile_context>

<pallas_src>
import functools

import jax
import jax.numpy as jnp
from jax.experimental import pallas as pl
from jax.experimental.pallas import tpu as pltpu

_LANE = 128
_SUBLANE = 8


def _round_up(v, m):
    return ((v + m - 1) // m) * m


def _round_down_to(v, m):
    return max(m, (v // m) * m)


def _vmem_capacity_bytes():
    try:
        info = pltpu.get_tpu_info()
        return int(getattr(info, "vmem_capacity_bytes", 128 * 1024 * 1024))
    except Exception:
        return 128 * 1024 * 1024


# --------------------------------------------------------------------------
# Single-pass kernel: whole (N, td) feature strip resident in VMEM.
# --------------------------------------------------------------------------
def _bn_single_pass_kernel(x_ref, lg_ref, beta_ref, y_ref, var_ref, *,
                           eps, inv_n):
    x = x_ref[...].astype(jnp.float32)                      # (N, TD)
    lg = lg_ref[...]                                        # (1, TD)
    beta = beta_ref[...]                                    # (1, TD)

    # Two-pass stats on the resident tile (extra VALU work is hidden under
    # HBM DMA; avoids E[x^2]-E[x]^2 cancellation).
    mean = jnp.sum(x, axis=0, keepdims=True) * inv_n
    xc = x - mean
    var = jnp.sum(xc * xc, axis=0, keepdims=True) * inv_n + eps

    # EUP work (exp/rsqrt) only on the (1, TD) row; hot path is one FMA/elem.
    scale = jnp.exp(lg) * jax.lax.rsqrt(var)
    y_ref[...] = (xc * scale + beta).astype(y_ref.dtype)
    var_ref[...] = var


# --------------------------------------------------------------------------
# Two-pass N-split path: stats kernel (N axis "arbitrary", accumulators in
# VMEM scratch) + apply kernel (fully parallel).
# --------------------------------------------------------------------------
def _bn_stats_kernel(x_ref, lg_ref, beta_ref, scale_ref, shift_ref, var_ref,
                     s1_ref, s2_ref, *, eps, inv_n, tn, n_total, mask_rows):
    ni = pl.program_id(1)

    @pl.when(ni == 0)
    def _():
        s1_ref[...] = jnp.zeros_like(s1_ref)
        s2_ref[...] = jnp.zeros_like(s2_ref)

    x = x_ref[...].astype(jnp.float32)                      # (TN, TD)
    if mask_rows:  # last N tile may run past the batch; zero invalid rows
        row = jax.lax.broadcasted_iota(jnp.int32, x.shape, 0) + ni * tn
        x = jnp.where(row < n_total, x, 0.0)

    s1_ref[...] += jnp.sum(x, axis=0, keepdims=True)
    s2_ref[...] += jnp.sum(x * x, axis=0, keepdims=True)

    @pl.when(ni == pl.num_programs(1) - 1)
    def _():
        mean = s1_ref[...] * inv_n
        # TODO(synk): one-pass E[x^2]-E[x]^2 across N tiles can lose precision
        # vs the reference's (x-mean)^2 when |mean| >> std; an exact match
        # would need a third pass over x.
        var = jnp.maximum(s2_ref[...] * inv_n - mean * mean, 0.0) + eps
        scale = jnp.exp(lg_ref[...]) * jax.lax.rsqrt(var)
        scale_ref[...] = scale
        shift_ref[...] = beta_ref[...] - mean * scale
        var_ref[...] = var


def _bn_apply_kernel(x_ref, scale_ref, shift_ref, y_ref):
    x = x_ref[...].astype(jnp.float32)
    y_ref[...] = (x * scale_ref[...] + shift_ref[...]).astype(y_ref.dtype)


# --------------------------------------------------------------------------
# Wrapper
# --------------------------------------------------------------------------
def batch_norm_flow_direct(x, log_gamma, beta, eps=1e-5, block_d=None,
                           block_n=None, force_two_pass=False):
    """Training-mode 'direct' forward of BatchNormFlow.

    Args:
      x: (N, D) inputs (any float dtype; compute in f32, y written in x.dtype).
      log_gamma, beta: (D,) parameters.
    Returns:
      y: (N, D) x.dtype, logdet: (1,) float32
    """
    n, d = x.shape
    out_dtype = x.dtype
    xb = x.dtype.itemsize
    yb = xb

    lg = log_gamma.reshape(1, d).astype(jnp.float32)
    bt = beta.reshape(1, d).astype(jnp.float32)

    vmem_cap = _vmem_capacity_bytes()
    budget = int(0.30 * vmem_cap)          # tile budget from physical VMEM
    dp128 = _round_up(d, _LANE)

    # Single-pass (whole-N strip resident) vs two-pass N-split decision:
    # can a double-buffered (N, 512)-ish x+y strip fit the budget?
    strip_bytes = 2 * n * min(512, dp128) * (xb + yb)
    two_pass = force_two_pass or strip_bytes > budget

    if not two_pass:
        # ---- feature tile width (lane multiple), VMEM- and megacore-aware --
        if block_d is None:
            td = _round_down_to(budget // (2 * n * (xb + yb)), _LANE)
            td = max(_LANE, min(td, 2048, dp128))
            # v7x: keep >= 2 feature tiles so "parallel" shards across both TCs
            if dp128 >= 2 * _LANE:
                td = min(td, _round_down_to(dp128 // 2, _LANE))
        else:
            td = int(block_d)
        if pl.cdiv(d, td) == 1:
            td = d                     # single full-width block, no masking
        grid_d = pl.cdiv(d, td)

        est = (2 * (n * td * (xb + yb) + 3 * td * 4)   # dbuf io + params/var
               + 2 * n * td * 4)                       # in-kernel f32 temps
        vmem_limit = int(min(max(1.4 * est, 32 * 1024 * 1024),
                             0.75 * vmem_cap))
        cost = pl.CostEstimate(flops=int(7 * n * d),
                               transcendentals=int(2 * d),
                               bytes_accessed=int(n * d * (xb + yb) + 16 * d))

        kernel = functools.partial(_bn_single_pass_kernel,
                                   eps=float(eps), inv_n=1.0 / float(n))
        y, var = pl.pallas_call(
            kernel,
            out_shape=(
                jax.ShapeDtypeStruct((n, d), out_dtype),
                jax.ShapeDtypeStruct((1, d), jnp.float32),
            ),
            grid=(grid_d,),
            in_specs=[
                pl.BlockSpec((n, td), lambda i: (0, i)),
                pl.BlockSpec((1, td), lambda i: (0, i)),
                pl.BlockSpec((1, td), lambda i: (0, i)),
            ],
            out_specs=(
                pl.BlockSpec((n, td), lambda i: (0, i)),
                pl.BlockSpec((1, td), lambda i: (0, i)),
            ),
            compiler_params=pltpu.CompilerParams(
                dimension_semantics=("parallel",),
                vmem_limit_bytes=vmem_limit),
            cost_estimate=cost,
        )(x, lg, bt)

    else:
        # ---- two-pass N-split (large N / small VMEM, e.g. v7x) -------------
        if block_d is None:
            td = min(512, dp128)
            if dp128 >= 2 * _LANE:
                td = min(td, _round_down_to(dp128 // 2, _LANE))
        else:
            td = int(block_d)
        if pl.cdiv(d, td) == 1:
            td = d
        grid_d = pl.cdiv(d, td)

        if block_n is None:
            tn = (budget // (2 * td * (xb + yb))) // _SUBLANE * _SUBLANE
            tn = max(_SUBLANE, min(tn, 4096))
        else:
            tn = int(block_n)
        if tn >= n:
            tn = n
        grid_n = pl.cdiv(n, tn)
        mask_rows = (n % tn) != 0

        est_stats = 2 * tn * td * xb + 2 * tn * td * 4 + 40 * td
        est_apply = 2 * tn * td * (xb + yb) + tn * td * 4 + 16 * td
        vmem_limit = int(min(max(1.4 * max(est_stats, est_apply),
                                 32 * 1024 * 1024), 0.75 * vmem_cap))

        kernel_s = functools.partial(
            _bn_stats_kernel, eps=float(eps), inv_n=1.0 / float(n),
            tn=tn, n_total=n, mask_rows=mask_rows)
        scale, shift, var = pl.pallas_call(
            kernel_s,
            out_shape=(
                jax.ShapeDtypeStruct((1, d), jnp.float32),
                jax.ShapeDtypeStruct((1, d), jnp.float32),
                jax.ShapeDtypeStruct((1, d), jnp.float32),
            ),
            grid=(grid_d, grid_n),
            in_specs=[
                pl.BlockSpec((tn, td), lambda di, ni: (ni, di)),
                pl.BlockSpec((1, td), lambda di, ni: (0, di)),
                pl.BlockSpec((1, td), lambda di, ni: (0, di)),
            ],
            out_specs=(
                pl.BlockSpec((1, td), lambda di, ni: (0, di)),
                pl.BlockSpec((1, td), lambda di, ni: (0, di)),
                pl.BlockSpec((1, td), lambda di, ni: (0, di)),
            ),
            scratch_shapes=[pltpu.VMEM((1, td), jnp.float32),
                            pltpu.VMEM((1, td), jnp.float32)],
            compiler_params=pltpu.CompilerParams(
                dimension_semantics=("parallel", "arbitrary"),
                vmem_limit_bytes=vmem_limit),
            cost_estimate=pl.CostEstimate(
                flops=int(3 * n * d), transcendentals=int(2 * d),
                bytes_accessed=int(n * d * xb + 24 * d)),
        )(x, lg, bt)

        y = pl.pallas_call(
            _bn_apply_kernel,
            out_shape=jax.ShapeDtypeStruct((n, d), out_dtype),
            grid=(grid_d, grid_n),
            in_specs=[
                pl.BlockSpec((tn, td), lambda di, ni: (ni, di)),
                pl.BlockSpec((1, td), lambda di, ni: (0, di)),
                pl.BlockSpec((1, td), lambda di, ni: (0, di)),
            ],
            out_specs=pl.BlockSpec((tn, td), lambda di, ni: (ni, di)),
            compiler_params=pltpu.CompilerParams(
                dimension_semantics=("parallel", "parallel"),
                vmem_limit_bytes=vmem_limit),
            cost_estimate=pl.CostEstimate(
                flops=int(2 * n * d), transcendentals=0,
                bytes_accessed=int(n * d * (xb + yb) + 8 * d)),
        )(x, scale, shift)

    # Tiny O(D) reduction; done in the wrapper so the D grid axis stays
    # "parallel" and no (1,1) masked stores happen per grid step.
    logdet = jnp.sum(lg - 0.5 * jnp.log(var), axis=-1).reshape(1)
    return y, logdet


# --------------------------------------------------------------------------
# Reference + self-test
# --------------------------------------------------------------------------
def _reference(x, log_gamma, beta, eps=1e-5):
    xf = x.astype(jnp.float32)
    mean = jnp.mean(xf, axis=0)
    var = jnp.mean((xf - mean) ** 2, axis=0) + eps
    y = jnp.exp(log_gamma) * (xf - mean) / jnp.sqrt(var) + beta
    ld = jnp.sum(log_gamma - 0.5 * jnp.log(var)).reshape(1)
    return y, ld


if __name__ == "__main__":
    key = jax.random.PRNGKey(0)
    k1, k2, k3 = jax.random.split(key, 3)

    # Case 1: module-default small shape (num_inputs=32, batch=8), zero params
    # as in nn.Parameter(torch.zeros(num_inputs)); single-pass path.
    n1, d1 = 8, 32
    x1 = jax.random.normal(k1, (n1, d1), dtype=jnp.float32)
    lg1 = jnp.zeros((d1,), dtype=jnp.float32)
    b1 = jnp.zeros((d1,), dtype=jnp.float32)
    y1, ld1 = batch_norm_flow_direct(x1, lg1, b1, eps=1e-5)
    jax.block_until_ready((y1, ld1))
    y1r, ld1r = _reference(x1, lg1, b1)
    assert y1.shape == (n1, d1) and ld1.shape == (1,)
    assert jnp.allclose(y1, y1r, atol=1e-5, rtol=1e-5)
    assert jnp.allclose(ld1, ld1r, atol=1e-5, rtol=1e-5)

    # Case 2: D not a multiple of 128 -> masked last feature tile (no pad/slice
    # HBM passes), non-trivial params; single-pass path.
    n2, d2 = 16, 200
    x2 = jax.random.normal(k2, (n2, d2), dtype=jnp.float32) * 2.0 + 0.5
    lg2 = 0.1 * jax.random.normal(k3, (d2,), dtype=jnp.float32)
    b2 = jnp.linspace(-1.0, 1.0, d2, dtype=jnp.float32)
    y2, ld2 = batch_norm_flow_direct(x2, lg2, b2, block_d=128)
    jax.block_until_ready((y2, ld2))
    y2r, ld2r = _reference(x2, lg2, b2)
    assert jnp.allclose(y2, y2r, atol=1e-4, rtol=1e-4)
    assert jnp.allclose(ld2, ld2r, atol=1e-4, rtol=1e-4)

    # Case 3: forced two-pass N-split (stats + apply kernels) with masked rows
    # and masked feature columns, at small shapes.
    n3, d3 = 20, 200
    x3 = jax.random.normal(k3, (n3, d3), dtype=jnp.float32) + 1.5
    y3, ld3 = batch_norm_flow_direct(x3, lg2, b2, block_d=128, block_n=8,
                                     force_two_pass=True)
    jax.block_until_ready((y3, ld3))
    y3r, ld3r = _reference(x3, lg2, b2)
    assert jnp.allclose(y3, y3r, atol=1e-4, rtol=1e-4)
    assert jnp.allclose(ld3, ld3r, atol=1e-4, rtol=1e-4)

    print("KERNEL_OK")
</pallas_src>

<mosaic_0001>
module attributes {stable_mosaic.version = 11 : i64} {
  func.func @_bn_single_pass_kernel(%arg0: i32, %arg1: memref<8x32xf32, #tpu.memory_space<vmem>>, %arg2: memref<1x32xf32, #tpu.memory_space<vmem>>, %arg3: memref<1x32xf32, #tpu.memory_space<vmem>>, %arg4: memref<8x32xf32, #tpu.memory_space<vmem>>, %arg5: memref<1x32xf32, #tpu.memory_space<vmem>>) attributes {dimension_semantics = [#tpu.dimension_semantics<parallel>], iteration_bounds = array<i64: 1>, scalar_prefetch = 0 : i64, scratch_operands = 0 : i64, tpu.core_type = #tpu.core_type<tc>, window_params = [{transform_indices = @transform_0, window_bounds = array<i64: 8, 32>}, {transform_indices = @transform_1, window_bounds = array<i64: 1, 32>}, {transform_indices = @transform_2, window_bounds = array<i64: 1, 32>}, {transform_indices = @transform_3, window_bounds = array<i64: 8, 32>}, {transform_indices = @transform_4, window_bounds = array<i64: 1, 32>}]} {
    %c0 = arith.constant 0 : index
    %c0_0 = arith.constant 0 : index
    %0 = vector.load %arg1[%c0, %c0_0] : memref<8x32xf32, #tpu.memory_space<vmem>>, vector<8x32xf32>
    %c0_1 = arith.constant 0 : index
    %c0_2 = arith.constant 0 : index
    %1 = vector.load %arg2[%c0_1, %c0_2] : memref<1x32xf32, #tpu.memory_space<vmem>>, vector<1x32xf32>
    %c0_3 = arith.constant 0 : index
    %c0_4 = arith.constant 0 : index
    %2 = vector.load %arg3[%c0_3, %c0_4] : memref<1x32xf32, #tpu.memory_space<vmem>>, vector<1x32xf32>
    %cst = arith.constant dense<0.000000e+00> : vector<32xf32>
    %3 = vector.multi_reduction <add>, %0, %cst [0] : vector<8x32xf32> to vector<32xf32>
    %4 = vector.shape_cast %3 : vector<32xf32> to vector<1x32xf32>
    %cst_5 = arith.constant 1.250000e-01 : f32
    %5 = vector.broadcast %cst_5 : f32 to vector<1x32xf32>
    %6 = arith.mulf %4, %5 : vector<1x32xf32>
    %7 = vector.broadcast %6 : vector<1x32xf32> to vector<8x32xf32>
    %8 = arith.subf %0, %7 : vector<8x32xf32>
    %9 = arith.mulf %8, %8 : vector<8x32xf32>
    %cst_6 = arith.constant dense<0.000000e+00> : vector<32xf32>
    %10 = vector.multi_reduction <add>, %9, %cst_6 [0] : vector<8x32xf32> to vector<32xf32>
    %11 = vector.shape_cast %10 : vector<32xf32> to vector<1x32xf32>
    %cst_7 = arith.constant 1.250000e-01 : f32
    %12 = vector.broadcast %cst_7 : f32 to vector<1x32xf32>
    %13 = arith.mulf %11, %12 : vector<1x32xf32>
    %cst_8 = arith.constant 9.99999974E-6 : f32
    %14 = vector.broadcast %cst_8 : f32 to vector<1x32xf32>
    %15 = arith.addf %13, %14 : vector<1x32xf32>
    %16 = math.exp %1 : vector<1x32xf32>
    %17 = math.rsqrt %15 : vector<1x32xf32>
    %18 = arith.mulf %16, %17 : vector<1x32xf32>
    %19 = vector.broadcast %18 : vector<1x32xf32> to vector<8x32xf32>
    %20 = arith.mulf %8, %19 : vector<8x32xf32>
    %21 = vector.broadcast %2 : vector<1x32xf32> to vector<8x32xf32>
    %22 = arith.addf %20, %21 : vector<8x32xf32>
    %c0_9 = arith.constant 0 : index
    %c0_10 = arith.constant 0 : index
    %23 = vector.load %arg4[%c0_9, %c0_10] : memref<8x32xf32, #tpu.memory_space<vmem>>, vector<8x32xf32>
    tpu.vector_store %arg4[%c0_9, %c0_10], %22 {strides = array<i32>} : memref<8x32xf32, #tpu.memory_space<vmem>>, vector<8x32xf32>,
    %c0_11 = arith.constant 0 : index
    %c0_12 = arith.constant 0 : index
    %24 = vector.load %arg5[%c0_11, %c0_12] : memref<1x32xf32, #tpu.memory_space<vmem>>, vector<1x32xf32>
    tpu.vector_store %arg5[%c0_11, %c0_12], %15 {strides = array<i32>} : memref<1x32xf32, #tpu.memory_space<vmem>>, vector<1x32xf32>,
    return
  }
  func.func @transform_0(%arg0: i32) -> (i32, i32) {
    %c0_i32 = arith.constant 0 : i32
    %c0_i32_0 = arith.constant 0 : i32
    return %c0_i32, %arg0 : i32, i32
  }
  func.func @transform_1(%arg0: i32) -> (i32, i32) {
    %c0_i32 = arith.constant 0 : i32
    %c0_i32_0 = arith.constant 0 : i32
    return %c0_i32, %arg0 : i32, i32
  }
  func.func @transform_2(%arg0: i32) -> (i32, i32) {
    %c0_i32 = arith.constant 0 : i32
    %c0_i32_0 = arith.constant 0 : i32
    return %c0_i32, %arg0 : i32, i32
  }
  func.func @transform_3(%arg0: i32) -> (i32, i32) {
    %c0_i32 = arith.constant 0 : i32
    %c0_i32_0 = arith.constant 0 : i32
    return %c0_i32, %arg0 : i32, i32
  }
  func.func @transform_4(%arg0: i32) -> (i32, i32) {
    %c0_i32 = arith.constant 0 : i32
    %c0_i32_0 = arith.constant 0 : i32
    return %c0_i32, %arg0 : i32, i32
  }
}

</mosaic_0001>

<llo_original>
// kernel: tpu_custom_call.1
$region0: #{tpu_custom_call.1}
  #allocation0 [shape = 'u32[]', space=smem, size = 0x4, offset = 0x4, fixed_abs, tag = 'smem constant byte address 0x4 - core index']
  #allocation1 [shape = 'u32[72,128]{1,0:T(1,128)}', space=vmem, size = 0x9000, scoped, tag = 'internal scratch']
  %s0 = inlined_call_operand.hbm [shape: f32[8,32], index: 0, kind: input, shape index: {}]
  %s1 = inlined_call_operand.hbm [shape: f32[1,32], index: 1, kind: input, shape index: {}]
  %s2 = inlined_call_operand.vmem [shape: f32[1,32], index: 2, kind: input, shape index: {}]
  %s3 = inlined_call_operand.hbm [shape: f32[8,32], index: 3, kind: output, shape index: {0}]
  %s4 = inlined_call_operand.hbm [shape: f32[1,32], index: 4, kind: output, shape index: {1}]
  %5 = xla_tuple %s3, %s4
  %s6 = sld [smem:[#allocation0]]
  $region38: #{tpu_custom_call.1} parent=0
    _
  %s8 = ssub.s32 1, %s6
  %s9 = scalar_select 0, %s8, %s6
  $region1: #{tpu_custom_call.1} parent=0
    #allocation2 [shape = 'u8[4096]{0}', space=vmem, size = 0x1000, scoped, tag = 'input window, operand 0, single buffered']
    #allocation3 [shape = 's32[1]{0}', space=sflag, size = 0x4, scoped, tag = 'scoped memory for tpu_custom_call.1']
    #allocation4 [shape = 's32[1]{0}', space=sflag, size = 0x4, scoped, tag = 'scoped memory for tpu_custom_call.1']
    #allocation5 [shape = 'u8[512]{0}', space=vmem, size = 0x400, scoped, tag = 'input window, operand 1, single buffered']
    #allocation6 [shape = 's32[1]{0}', space=sflag, size = 0x4, scoped, tag = 'scoped memory for tpu_custom_call.1']
    #allocation7 [shape = 'u8[4096]{0}', space=vmem, size = 0x1000, scoped, tag = 'output window, operand 0, single buffered']
    #allocation8 [shape = 'u8[512]{0}', space=vmem, size = 0x400, scoped, tag = 'output window, operand 1, single buffered']
    #allocation9 [shape = 's32[1]{0}', space=sflag, size = 0x4, scoped, tag = 'scoped memory for tpu_custom_call.1']
    %10 = vsyncpa [#allocation3], 0
    %11 = vsyncpa [#allocation6], 0
    %12 = vsyncpa [#allocation4], 0
    %13 = vsyncpa [#allocation9], 0
    // Predicated region
    $region2: #{tpu_custom_call.1} parent=1 // pred_check
      _
    $region3: #{tpu_custom_call.1} parent=1 // pred_check_branch
      %15 = sbr.rel (0) target = $region5
    $region4: #{tpu_custom_call.1} parent=1 // pred_region
      %17 = vsyncadd [#allocation3], 0
      %s19 = sshll.u32 %s0, 4
      %s20 = int_to_ptr.hbm [resolvable:$true] %s19
      %s21 = sshll.u32 [#allocation2], 4
      %s22 = int_to_ptr.vmem [resolvable:$true] %s21
      %24 = dma.hbm_to_vmem [thread:$0]  %s20, 128, %s22, [#allocation3]
    $region5: #{tpu_custom_call.1} parent=1 // pred_fallthru
      _
    // Predicated region
    $region6: #{tpu_custom_call.1} parent=1 // pred_check
      _
    $region7: #{tpu_custom_call.1} parent=1 // pred_check_branch
      %26 = sbr.rel (0) target = $region9
    $region8: #{tpu_custom_call.1} parent=1 // pred_region
      %28 = vsyncadd [#allocation6], 0
      %s30 = sshll.u32 %s1, 4
      %s31 = int_to_ptr.hbm [resolvable:$true] %s30
      %s32 = sshll.u32 [#allocation5], 4
      %s33 = int_to_ptr.vmem [resolvable:$true] %s32
      %35 = dma.hbm_to_vmem [thread:$0]  %s31, 16, %s33, [#allocation6]
    $region9: #{tpu_custom_call.1} parent=1 // pred_fallthru
      _
    // Predicated region
    $region10: #{tpu_custom_call.1} parent=1 // pred_check
      _
    $region11: #{tpu_custom_call.1} parent=1 // pred_check_branch
      %37 = sbr.rel (0) target = $region13
    $region12: #{tpu_custom_call.1} parent=1 // pred_region
      _
    $region13: #{tpu_custom_call.1} parent=1 // pred_fallthru
      _
    // Predicated region
    $region14: #{tpu_custom_call.1} parent=1 // pred_check
      _
    $region15: #{tpu_custom_call.1} parent=1 // pred_check_branch
      %39 = sbr.rel (0) target = $region17
    $region16: #{tpu_custom_call.1} parent=1 // pred_region
      %41 = dma.done [#allocation3], 128
    $region17: #{tpu_custom_call.1} parent=1 // pred_fallthru
      _
    // Predicated region
    $region18: #{tpu_custom_call.1} parent=1 // pred_check
      _
    $region19: #{tpu_custom_call.1} parent=1 // pred_check_branch
      %43 = sbr.rel (0) target = $region21
    $region20: #{tpu_custom_call.1} parent=1 // pred_region
      %45 = dma.done [#allocation6], 16
    $region21: #{tpu_custom_call.1} parent=1 // pred_fallthru
      _
    %v46 = vld [vmem:[#allocation2] sm:$0xff]
    %v47 = vld [vmem:[#allocation5] sm:$0x1]
    %v48 = vld [vmem:[%s2] sm:$0x1]
    %vm49 = vcmask 261120
    %v50 = vsel %vm49, %v46, 0.0
    %v51 = vrot.slane %v50, 4
    %v52 = vadd.f32 %v50, %v51
    %v53 = vrot.slane %v52, 2
    %v54 = vadd.f32 %v52, %v53
    %v55 = vrot.slane %v54, 1
    %v56 = vadd.f32 %v54, %v55
    %v57 = vmul.f32 %v56, 0.125
    %v58 = vsub.f32 %v46, %v57
    %v59 = vmul.f32 %v58, %v58
    %v60 = vsel %vm49, %v59, 0.0
    %v61 = vrot.slane %v60, 4
    %v62 = vadd.f32 %v60, %v61
    %v63 = vrot.slane %v62, 2
    %v64 = vadd.f32 %v62, %v63
    %v65 = vrot.slane %v64, 1
    %v66 = vadd.f32 %v64, %v65
    %v67 = vmul.f32 %v66, 0.125
    %v68 = vadd.f32 %v67, 1e-05
    %v69 = vmul.f32 %v47, 1.442695
    %v70 = vpow.pop %v69
    %v71 = vrsqrt.pop %v68
    %v72 = vmul.f32 %v71, %v68
    %v73 = vmul.f32 %v72, %v71
    %v74 = vmul.f32 0.5, %v73
    %v75 = vsub.f32 1.5, %v74
    %v76 = vmul.f32 %v71, %v75
    %vm77 = vweird.f32 %v68
    %vm78 = vweird.f32 %v71
    %vm79 = vmor %vm77, %vm78
    %v80 = vsel %vm79, %v71, %v76
    %v81 = vmul.f32 %v70, %v80
    %v83 = vperm.slane %v81, 0
    %v85 = vmul.f32 %v58, %v83
    %v87 = vperm.slane %v48, 0
    %v89 = vadd.f32 %v85, %v87
    %90 = vst.msk [vmem:[#allocation7] sm:$0xff] %vm49, %v89
    %vm91 = vcmask 253952
    %92 = vst.msk [vmem:[#allocation8] sm:$0x1] %vm91, %v68
    // Predicated region
    $region22: #{tpu_custom_call.1} parent=1 // pred_check
      _
    $region23: #{tpu_custom_call.1} parent=1 // pred_check_branch
      %94 = sbr.rel (0) target = $region25
    $region24: #{tpu_custom_call.1} parent=1 // pred_region
      %96 = vsyncadd [#allocation4], 0
      %s98 = sshll.u32 [#allocation7], 4
      %s99 = int_to_ptr.vmem [resolvable:$true] %s98
      %s100 = sshll.u32 %s3, 4
      %s101 = int_to_ptr.hbm [resolvable:$true] %s100
      %103 = dma.vmem_to_hbm [thread:$0]  %s99, 128, %s101, [#allocation4]
    $region25: #{tpu_custom_call.1} parent=1 // pred_fallthru
      _
    // Predicated region
    $region26: #{tpu_custom_call.1} parent=1 // pred_check
      _
    $region27: #{tpu_custom_call.1} parent=1 // pred_check_branch
      %105 = sbr.rel (0) target = $region29
    $region28: #{tpu_custom_call.1} parent=1 // pred_region
      %107 = vsyncadd [#allocation9], 0
      %s109 = sshll.u32 [#allocation8], 4
      %s110 = int_to_ptr.vmem [resolvable:$true] %s109
      %s111 = sshll.u32 %s4, 4
      %s112 = int_to_ptr.hbm [resolvable:$true] %s111
      %114 = dma.vmem_to_hbm [thread:$0]  %s110, 16, %s112, [#allocation9]
    $region29: #{tpu_custom_call.1} parent=1 // pred_fallthru
      _
    // Predicated region
    $region30: #{tpu_custom_call.1} parent=1 // pred_check
      _
    $region31: #{tpu_custom_call.1} parent=1 // pred_check_branch
      %116 = sbr.rel (0) target = $region33
    $region32: #{tpu_custom_call.1} parent=1 // pred_region
      %118 = dma.done [#allocation4], 128
    $region33: #{tpu_custom_call.1} parent=1 // pred_fallthru
      _
    // Predicated region
    $region34: #{tpu_custom_call.1} parent=1 // pred_check
      _
    $region35: #{tpu_custom_call.1} parent=1 // pred_check_branch
      %120 = sbr.rel (0) target = $region37
    $region36: #{tpu_custom_call.1} parent=1 // pred_region
      %122 = dma.done [#allocation9], 16
    $region37: #{tpu_custom_call.1} parent=1 // pred_fallthru
      _
    %123 = vsyncpa [#allocation3], 1
    %124 = vsyncpa [#allocation6], 1
    %125 = vsyncpa [#allocation4], 1
    %126 = vsyncpa [#allocation9], 1

</llo_original>
